<compile_context>
chip_gen: v6e
topology: v6e:2x2x1
jax: 0.10.0
libtpu: 0.0.40
codegen_flags: <defaults>
</compile_context>

<pallas_src>
import math

import numpy as np
import jax
import jax.numpy as jnp
from jax.experimental import pallas as pl
from jax.experimental.pallas import tpu as pltpu

_HALF_EPS = 0.5e-6  # 0.5 * eps, eps = 1e-6 as in nn.CosineSimilarity (Python float -> literal)


def _make_kernel(protos, ldl: bool):
    """Build the kernel body.  `protos` is a tuple of per-class Python-float tuples."""
    C = len(protos)

    if ldl:
        # protos[c] = (v_c, a_c, 0.5*||e_c||)
        # cos > 0.5  <=>  dot > 0.5 * max(||x||*||e_c||, eps)
        #            <=>  dot > max(||x|| * (0.5*||e_c||), 0.5*eps)
        def kernel(x_ref, out_ref):
            # x_ref: (2, TBr, 128) f32;  out_ref: (C, TBr, 128) f32
            x0 = x_ref[0]                                   # (TBr, 128) valence logit
            x1 = x_ref[1]                                   # (TBr, 128) arousal logit
            xn = jnp.sqrt(x0 * x0 + x1 * x1)                # ||x|| per row (EUP)
            for c in range(C):                              # C <= 11, unrolled
                v, a, half_en = protos[c]
                dot = x0 * v + x1 * a
                thr = jnp.maximum(xn * half_en, _HALF_EPS)
                out_ref[c] = (dot > thr).astype(jnp.float32)   # direct per-class store
    else:
        # protos[c] = (v_c/||e_c||, a_c/||e_c||)
        # argmax_c cos[b,c] == argmax_c (x_b . e_c/||e_c||)  (||x_b|| is a common
        # positive factor; all-zero rows give index 0 in both formulations).
        def kernel(x_ref, out_ref):
            # x_ref: (2, TBr, 128) f32;  out_ref: (TBr, 128) int32
            x0 = x_ref[0]
            x1 = x_ref[1]
            v0, a0 = protos[0]
            best_v = x0 * v0 + x1 * a0
            best_i = jnp.zeros(best_v.shape, jnp.int32)
            for c in range(1, C):                           # first-max wins (ties)
                v, a = protos[c]
                d = x0 * v + x1 * a
                gt = d > best_v
                best_v = jnp.where(gt, d, best_v)
                best_i = jnp.where(gt, c, best_i)
            out_ref[...] = best_i

    return kernel


def convert_logits_to_classes(logits, emo_cates_vad, *, ldl=False, block_rows=512):
    """Pallas wrapper. logits: (B, 2) float. emo_cates_vad: (C, 2) float (compile-time constant)."""
    logits = jnp.asarray(logits, jnp.float32)
    B, D = logits.shape
    assert D == 2

    # Host-side precompute of the tiny constant prototype table (C <= 11) as
    # Python floats baked into the kernel (no SMEM table, no captured jnp consts).
    emo_np = np.asarray(emo_cates_vad, dtype=np.float64)
    C = int(emo_np.shape[0])
    assert emo_np.shape[1] == 2
    protos = []
    for c in range(C):
        v, a = float(emo_np[c, 0]), float(emo_np[c, 1])
        en = math.sqrt(v * v + a * a)
        protos.append((v, a, 0.5 * en) if ldl else (v / en, a / en))
    protos = tuple(protos)

    # Sublane-dense layout: batch -> (rows, 128) with rows on the sublane axis.
    R = -(-B // 128)                          # sublane rows needed
    block_rows = max(8, (block_rows // 8) * 8)
    if R <= block_rows:
        TBr, Rp = R, R                        # single tile (block == full extent)
    else:
        TBr = block_rows                      # multiple of 8 -> (8,128)-aligned
        Rp = -(-R // TBr) * TBr
    Bp = Rp * 128
    grid = (Rp // TBr,)

    # (B,2) -> (2, Rp, 128), zero-padded tail (padded rows never survive the slice).
    x3 = jnp.pad(logits.T, ((0, 0), (0, Bp - B))).reshape(2, Rp, 128)

    if ldl:
        out_shape = jax.ShapeDtypeStruct((C, Rp, 128), jnp.float32)
        out_spec = pl.BlockSpec((C, TBr, 128), lambda i: (0, i, 0))
        out_bytes = C * Bp * 4
        transc = Bp                          # one sqrt per batch row
    else:
        out_shape = jax.ShapeDtypeStruct((Rp, 128), jnp.int32)
        out_spec = pl.BlockSpec((TBr, 128), lambda i: (i, 0))
        out_bytes = Bp * 4
        transc = 0

    cost = pl.CostEstimate(
        flops=int(6 * C * Bp),
        transcendentals=int(transc),
        bytes_accessed=int(2 * Bp * 4 + out_bytes),
    )

    out = pl.pallas_call(
        _make_kernel(protos, ldl),
        out_shape=out_shape,
        grid=grid,
        in_specs=[pl.BlockSpec((2, TBr, 128), lambda i: (0, i, 0))],   # logits^T tile
        out_specs=out_spec,
        compiler_params=pltpu.CompilerParams(
            dimension_semantics=("parallel",)),   # megacore sharding on v7x, no-op elsewhere
        cost_estimate=cost,
    )(x3)

    if ldl:
        # Restore the module's (B, C) float32 contract (transpose done outside the kernel).
        return out.reshape(C, Bp)[:, :B].T
    return out.reshape(Bp)[:B]


def build_emo_cates_vad(dataname: str):
    """Deterministic synthetic (v, a) per label, mirroring lexicon * 8 + 1."""
    if dataname in ("flickr", "instagram"):
        label_names = ["positive", "negative", "neutral"]
    else:  # 'FI', 'FlickrLDL', 'TwitterLDL'
        label_names = ["amusement", "awe", "contentment", "excitement",
                       "anger", "disgust", "fear", "sadness"]
    raw = {
        "positive":    (0.960, 0.493),
        "negative":    (0.095, 0.620),
        "neutral":     (0.500, 0.260),
        "amusement":   (0.929, 0.837),
        "awe":         (0.469, 0.740),
        "contentment": (0.875, 0.260),
        "excitement":  (0.908, 0.931),
        "anger":       (0.122, 0.830),
        "disgust":     (0.051, 0.773),
        "fear":        (0.073, 0.840),
        "sadness":     (0.052, 0.288),
    }
    vad = [[raw[n][0] * 8.0 + 1.0, raw[n][1] * 8.0 + 1.0] for n in label_names]
    return jnp.asarray(vad, jnp.float32)


def _reference(logits, emo, ldl):
    """Plain-JAX reference matching the PyTorch forward."""
    eps = 1e-6
    dots = logits @ emo.T
    xn = jnp.linalg.norm(logits, axis=1, keepdims=True)
    en = jnp.linalg.norm(emo, axis=1, keepdims=True)
    cos = dots / jnp.maximum(xn * en.T, eps)
    if ldl:
        return jnp.where(cos > 0.5, 1.0, 0.0).astype(jnp.float32)
    return jnp.argmax(cos, axis=1).astype(jnp.int32)


if __name__ == "__main__":
    key = jax.random.PRNGKey(0)
    B = 8
    logits = jax.random.uniform(key, (B, 2), jnp.float32, minval=1.0, maxval=9.0)

    # --- argmax mode (dataname='FI') ---
    emo_fi = build_emo_cates_vad("FI")
    pred_fi = convert_logits_to_classes(logits, emo_fi, ldl=False)
    jax.block_until_ready(pred_fi)
    ref_fi = _reference(logits, emo_fi, ldl=False)
    assert pred_fi.shape == (B,) and pred_fi.dtype == jnp.int32
    assert bool(jnp.all(pred_fi == ref_fi))

    # --- LDL / threshold mode (dataname='FlickrLDL') ---
    emo_ldl = build_emo_cates_vad("FlickrLDL")
    pred_ldl = convert_logits_to_classes(logits, emo_ldl, ldl=True)
    jax.block_until_ready(pred_ldl)
    ref_ldl = _reference(logits, emo_ldl, ldl=True)
    assert pred_ldl.shape == (B, emo_ldl.shape[0]) and pred_ldl.dtype == jnp.float32
    assert bool(jnp.all(pred_ldl == ref_ldl))

    print("KERNEL_OK")
</pallas_src>

<mosaic_0001>
module attributes {stable_mosaic.version = 11 : i64} {
  func.func @kernel(%arg0: i32, %arg1: memref<2x1x128xf32, #tpu.memory_space<vmem>>, %arg2: memref<1x128xi32, #tpu.memory_space<vmem>>) attributes {dimension_semantics = [#tpu.dimension_semantics<parallel>], iteration_bounds = array<i64: 1>, scalar_prefetch = 0 : i64, scratch_operands = 0 : i64, tpu.core_type = #tpu.core_type<tc>, window_params = [{transform_indices = @transform_0, window_bounds = array<i64: 2, 1, 128>}, {transform_indices = @transform_1, window_bounds = array<i64: 1, 128>}]} {
    %c0 = arith.constant 0 : index
    %c0_0 = arith.constant 0 : index
    %c0_1 = arith.constant 0 : index
    %0 = vector.load %arg1[%c0, %c0_0, %c0_1] : memref<2x1x128xf32, #tpu.memory_space<vmem>>, vector<1x1x128xf32>
    %1 = vector.shape_cast %0 : vector<1x1x128xf32> to vector<1x128xf32>
    %c1 = arith.constant 1 : index
    %c0_2 = arith.constant 0 : index
    %c0_3 = arith.constant 0 : index
    %2 = vector.load %arg1[%c1, %c0_2, %c0_3] : memref<2x1x128xf32, #tpu.memory_space<vmem>>, vector<1x1x128xf32>
    %3 = vector.shape_cast %2 : vector<1x1x128xf32> to vector<1x128xf32>
    %cst = arith.constant 0.73860687 : f32
    %4 = vector.broadcast %cst : f32 to vector<1x128xf32>
    %5 = arith.mulf %1, %4 : vector<1x128xf32>
    %cst_4 = arith.constant 0.6741364 : f32
    %6 = vector.broadcast %cst_4 : f32 to vector<1x128xf32>
    %7 = arith.mulf %3, %6 : vector<1x128xf32>
    %8 = arith.addf %5, %7 : vector<1x128xf32>
    %c0_i32 = arith.constant 0 : i32
    %9 = vector.broadcast %c0_i32 : i32 to vector<1x128xi32>
    %cst_5 = arith.constant 0.566083848 : f32
    %10 = vector.broadcast %cst_5 : f32 to vector<1x128xf32>
    %11 = arith.mulf %1, %10 : vector<1x128xf32>
    %cst_6 = arith.constant 0.824347674 : f32
    %12 = vector.broadcast %cst_6 : f32 to vector<1x128xf32>
    %13 = arith.mulf %3, %12 : vector<1x128xf32>
    %14 = arith.addf %11, %13 : vector<1x128xf32>
    %15 = arith.cmpf ogt, %14, %8 : vector<1x128xf32>
    %16 = arith.select %15, %14, %8 : vector<1x128xi1>, vector<1x128xf32>
    %c1_i32 = arith.constant 1 : i32
    %17 = vector.broadcast %c1_i32 : i32 to vector<1x128xi32>
    %18 = arith.select %15, %17, %9 : vector<1x128xi1>, vector<1x128xi32>
    %cst_7 = arith.constant 0.933225274 : f32
    %19 = vector.broadcast %cst_7 : f32 to vector<1x128xf32>
    %20 = arith.mulf %1, %19 : vector<1x128xf32>
    %cst_8 = arith.constant 0.359291732 : f32
    %21 = vector.broadcast %cst_8 : f32 to vector<1x128xf32>
    %22 = arith.mulf %3, %21 : vector<1x128xf32>
    %23 = arith.addf %20, %22 : vector<1x128xf32>
    %24 = arith.cmpf ogt, %23, %16 : vector<1x128xf32>
    %25 = arith.select %24, %23, %16 : vector<1x128xi1>, vector<1x128xf32>
    %c2_i32 = arith.constant 2 : i32
    %26 = vector.broadcast %c2_i32 : i32 to vector<1x128xi32>
    %27 = arith.select %24, %26, %18 : vector<1x128xi1>, vector<1x128xi32>
    %cst_9 = arith.constant 0.699279129 : f32
    %28 = vector.broadcast %cst_9 : f32 to vector<1x128xf32>
    %29 = arith.mulf %1, %28 : vector<1x128xf32>
    %cst_10 = arith.constant 0.714848757 : f32
    %30 = vector.broadcast %cst_10 : f32 to vector<1x128xf32>
    %31 = arith.mulf %3, %30 : vector<1x128xf32>
    %32 = arith.addf %29, %31 : vector<1x128xf32>
    %33 = arith.cmpf ogt, %32, %25 : vector<1x128xf32>
    %34 = arith.select %33, %32, %25 : vector<1x128xi1>, vector<1x128xf32>
    %c3_i32 = arith.constant 3 : i32
    %35 = vector.broadcast %c3_i32 : i32 to vector<1x128xi32>
    %36 = arith.select %33, %35, %27 : vector<1x128xi1>, vector<1x128xi32>
    %cst_11 = arith.constant 0.250399202 : f32
    %37 = vector.broadcast %cst_11 : f32 to vector<1x128xf32>
    %38 = arith.mulf %1, %37 : vector<1x128xf32>
    %cst_12 = arith.constant 0.968142688 : f32
    %39 = vector.broadcast %cst_12 : f32 to vector<1x128xf32>
    %40 = arith.mulf %3, %39 : vector<1x128xf32>
    %41 = arith.addf %38, %40 : vector<1x128xf32>
    %42 = arith.cmpf ogt, %41, %34 : vector<1x128xf32>
    %43 = arith.select %42, %41, %34 : vector<1x128xi1>, vector<1x128xf32>
    %c4_i32 = arith.constant 4 : i32
    %44 = vector.broadcast %c4_i32 : i32 to vector<1x128xi32>
    %45 = arith.select %42, %44, %36 : vector<1x128xi1>, vector<1x128xi32>
    %cst_13 = arith.constant 0.192331925 : f32
    %46 = vector.broadcast %cst_13 : f32 to vector<1x128xf32>
    %47 = arith.mulf %1, %46 : vector<1x128xf32>
    %cst_14 = arith.constant 0.981329917 : f32
    %48 = vector.broadcast %cst_14 : f32 to vector<1x128xf32>
    %49 = arith.mulf %3, %48 : vector<1x128xf32>
    %50 = arith.addf %47, %49 : vector<1x128xf32>
    %51 = arith.cmpf ogt, %50, %43 : vector<1x128xf32>
    %52 = arith.select %51, %50, %43 : vector<1x128xi1>, vector<1x128xf32>
    %c5_i32 = arith.constant 5 : i32
    %53 = vector.broadcast %c5_i32 : i32 to vector<1x128xi32>
    %54 = arith.select %51, %53, %45 : vector<1x128xi1>, vector<1x128xi32>
    %cst_15 = arith.constant 0.200994104 : f32
    %55 = vector.broadcast %cst_15 : f32 to vector<1x128xf32>
    %56 = arith.mulf %1, %55 : vector<1x128xf32>
    %cst_16 = arith.constant 0.979592442 : f32
    %57 = vector.broadcast %cst_16 : f32 to vector<1x128xf32>
    %58 = arith.mulf %3, %57 : vector<1x128xf32>
    %59 = arith.addf %56, %58 : vector<1x128xf32>
    %60 = arith.cmpf ogt, %59, %52 : vector<1x128xf32>
    %61 = arith.select %60, %59, %52 : vector<1x128xi1>, vector<1x128xf32>
    %c6_i32 = arith.constant 6 : i32
    %62 = vector.broadcast %c6_i32 : i32 to vector<1x128xi32>
    %63 = arith.select %60, %62, %54 : vector<1x128xi1>, vector<1x128xi32>
    %cst_17 = arith.constant 0.393919319 : f32
    %64 = vector.broadcast %cst_17 : f32 to vector<1x128xf32>
    %65 = arith.mulf %1, %64 : vector<1x128xf32>
    %cst_18 = arith.constant 0.919145047 : f32
    %66 = vector.broadcast %cst_18 : f32 to vector<1x128xf32>
    %67 = arith.mulf %3, %66 : vector<1x128xf32>
    %68 = arith.addf %65, %67 : vector<1x128xf32>
    %69 = arith.cmpf ogt, %68, %61 : vector<1x128xf32>
    %c7_i32 = arith.constant 7 : i32
    %70 = vector.broadcast %c7_i32 : i32 to vector<1x128xi32>
    %71 = arith.select %69, %70, %63 : vector<1x128xi1>, vector<1x128xi32>
    %c0_19 = arith.constant 0 : index
    %c0_20 = arith.constant 0 : index
    %72 = vector.load %arg2[%c0_19, %c0_20] : memref<1x128xi32, #tpu.memory_space<vmem>>, vector<1x128xi32>
    tpu.vector_store %arg2[%c0_19, %c0_20], %71 {strides = array<i32>} : memref<1x128xi32, #tpu.memory_space<vmem>>, vector<1x128xi32>,
    return
  }
  func.func @transform_0(%arg0: i32) -> (i32, i32, i32) {
    %c0_i32 = arith.constant 0 : i32
    %c0_i32_0 = arith.constant 0 : i32
    %c0_i32_1 = arith.constant 0 : i32
    return %c0_i32, %arg0, %c0_i32_0 : i32, i32, i32
  }
  func.func @transform_1(%arg0: i32) -> (i32, i32) {
    %c0_i32 = arith.constant 0 : i32
    %c0_i32_0 = arith.constant 0 : i32
    return %arg0, %c0_i32 : i32, i32
  }
}

</mosaic_0001>

<llo_original>
// kernel: tpu_custom_call.1
$region0: #{tpu_custom_call.1}
  #allocation0 [shape = 'u32[]', space=smem, size = 0x4, offset = 0x4, fixed_abs, tag = 'smem constant byte address 0x4 - core index']
  #allocation1 [shape = 'u32[144,128]{1,0:T(1,128)}', space=vmem, size = 0x12000, scoped, tag = 'internal scratch']
  %s0 = inlined_call_operand.hbm [shape: f32[2,1,128], index: 0, kind: input, shape index: {}]
  %s1 = inlined_call_operand.hbm [shape: s32[1,128], index: 1, kind: output, shape index: {}]
  %s2 = sld [smem:[#allocation0]]
  $region18: #{tpu_custom_call.1} parent=0
    _
  %s4 = ssub.s32 1, %s2
  %s5 = scalar_select 0, %s4, %s2
  $region1: #{tpu_custom_call.1} parent=0
    #allocation2 [shape = 'u8[1024]{0}', space=vmem, size = 0x400, scoped, tag = 'input window, operand 0, single buffered']
    #allocation3 [shape = 's32[1]{0}', space=sflag, size = 0x4, scoped, tag = 'scoped memory for tpu_custom_call.1']
    #allocation4 [shape = 's32[1]{0}', space=sflag, size = 0x4, scoped, tag = 'scoped memory for tpu_custom_call.1']
    #allocation5 [shape = 'u8[512]{0}', space=vmem, size = 0x400, scoped, tag = 'output window, operand 0, single buffered']
    %6 = vsyncpa [#allocation3], 0
    %7 = vsyncpa [#allocation4], 0
    // Predicated region
    $region2: #{tpu_custom_call.1} parent=1 // pred_check
      _
    $region3: #{tpu_custom_call.1} parent=1 // pred_check_branch
      %9 = sbr.rel (0) target = $region5
    $region4: #{tpu_custom_call.1} parent=1 // pred_region
      %s11 = ssub.s32 32, 32
      %12 = vsyncadd [#allocation3], %s11
      %s13 = sshll.u32 [#allocation2], 4
      %s14 = int_to_ptr.vmem [resolvable:$true] %s13
      %19 = dma.hbm_to_vmem [thread:$0]  %s0, 32, %s14, [#allocation3], 16, 16, 1
    $region5: #{tpu_custom_call.1} parent=1 // pred_fallthru
      _
    // Predicated region
    $region6: #{tpu_custom_call.1} parent=1 // pred_check
      _
    $region7: #{tpu_custom_call.1} parent=1 // pred_check_branch
      %21 = sbr.rel (0) target = $region9
    $region8: #{tpu_custom_call.1} parent=1 // pred_region
      %22 = dma.done [#allocation3], 32
    $region9: #{tpu_custom_call.1} parent=1 // pred_fallthru
      _
    %v23 = vld [vmem:[#allocation2] sm:$0x1]
    %s24 = scalar_lea.vmem [#allocation2], 1
    %v25 = vld [vmem:[%s24] sm:$0x1]
    %v26 = vmul.f32 %v23, 0.73860687
    %v27 = vmul.f32 %v25, 0.6741364
    %v28 = vadd.f32 %v26, %v27
    %v29 = vmul.f32 %v23, 0.56608385
    %v30 = vmul.f32 %v25, 0.8243477
    %v31 = vadd.f32 %v29, %v30
    %vm32 = vcmp.gt.f32.partialorder %v31, %v28
    %v33 = vsel %vm32, %v31, %v28
    %v34 = vsel %vm32, 1, 0
    %v35 = vmul.f32 %v23, 0.9332253
    %v36 = vmul.f32 %v25, 0.35929173
    %v37 = vadd.f32 %v35, %v36
    %vm38 = vcmp.gt.f32.partialorder %v37, %v33
    %v39 = vsel %vm38, %v37, %v33
    %v40 = vsel %vm38, 2, %v34
    %v41 = vmul.f32 %v23, 0.6992791
    %v42 = vmul.f32 %v25, 0.71484876
    %v43 = vadd.f32 %v41, %v42
    %vm44 = vcmp.gt.f32.partialorder %v43, %v39
    %v45 = vsel %vm44, %v43, %v39
    %v46 = vsel %vm44, 3, %v40
    %v47 = vmul.f32 %v23, 0.2503992
    %v48 = vmul.f32 %v25, 0.9681427
    %v49 = vadd.f32 %v47, %v48
    %vm50 = vcmp.gt.f32.partialorder %v49, %v45
    %v51 = vsel %vm50, %v49, %v45
    %v52 = vsel %vm50, 4, %v46
    %v53 = vmul.f32 %v23, 0.19233193
    %v54 = vmul.f32 %v25, 0.9813299
    %v55 = vadd.f32 %v53, %v54
    %vm56 = vcmp.gt.f32.partialorder %v55, %v51
    %v57 = vsel %vm56, %v55, %v51
    %v58 = vsel %vm56, 5, %v52
    %v59 = vmul.f32 %v23, 0.2009941
    %v60 = vmul.f32 %v25, 0.97959244
    %v61 = vadd.f32 %v59, %v60
    %vm62 = vcmp.gt.f32.partialorder %v61, %v57
    %v63 = vsel %vm62, %v61, %v57
    %v64 = vsel %vm62, 6, %v58
    %v65 = vmul.f32 %v23, 0.39391932
    %v66 = vmul.f32 %v25, 0.91914505
    %v67 = vadd.f32 %v65, %v66
    %vm68 = vcmp.gt.f32.partialorder %v67, %v63
    %v69 = vsel %vm68, 7, %v64
    %70 = vst [vmem:[#allocation5] sm:$0x1] %v69
    // Predicated region
    $region10: #{tpu_custom_call.1} parent=1 // pred_check
      _
    $region11: #{tpu_custom_call.1} parent=1 // pred_check_branch
      %72 = sbr.rel (0) target = $region13
    $region12: #{tpu_custom_call.1} parent=1 // pred_region
      %s74 = ssub.s32 16, 16
      %75 = vsyncadd [#allocation4], %s74
      %s77 = sshll.u32 [#allocation5], 4
      %s78 = int_to_ptr.vmem [resolvable:$true] %s77
      %80 = dma.vmem_to_hbm [thread:$0]  %s78, 16, %s1, [#allocation4]
    $region13: #{tpu_custom_call.1} parent=1 // pred_fallthru
      _
    // Predicated region
    $region14: #{tpu_custom_call.1} parent=1 // pred_check
      _
    $region15: #{tpu_custom_call.1} parent=1 // pred_check_branch
      %82 = sbr.rel (0) target = $region17
    $region16: #{tpu_custom_call.1} parent=1 // pred_region
      %83 = dma.done [#allocation4], 16
    $region17: #{tpu_custom_call.1} parent=1 // pred_fallthru
      _
    %84 = vsyncpa [#allocation3], 1
    %85 = vsyncpa [#allocation4], 1

</llo_original>
